<compile_context>
chip_gen: v7x
topology: tpu7x:2x2x1
jax: 0.10.0
libtpu: 0.0.40
codegen_flags: <defaults>
</compile_context>

<pallas_src>
import jax
import jax.numpy as jnp
from jax.experimental import pallas as pl
from jax.experimental.pallas import tpu as pltpu


def _hedge_kernel(x_ref, w1_ref, b1_ref, w2_ref, b2_ref, hedge_ref):
    """One batch tile; all T DenseLayers fused into two 2-D MXU matmuls.

    x_ref     : (Bb, (T+1)*A)   prices; batch on sublanes, time*asset flat on lanes
    w1_ref    : (T*A, T*nodes)  block-diagonal stack of w1[t].T
    b1_ref    : (1, T*nodes)    linear1 biases (lane-dense)
    w2_ref    : (T*nodes, T*A)  block-diagonal stack of w2[t].T
    b2_ref    : (1, T*A)        linear2 biases (lane-dense)
    hedge_ref : (Bb, 1)         hedge output
    """
    TA = w1_ref.shape[0]                 # T * A
    A = x_ref.shape[1] - TA              # num_assets

    x = x_ref[...]                       # (Bb, (T+1)*A)
    price = x[:, :TA]                    # (Bb, T*A)  price at step t
    dx = x[:, A:] - price                # (Bb, T*A)  price increment at step t

    # h_t = tanh(price_t @ W1_t.T + b1_t) for all t at once (K = T*A).
    h = jnp.tanh(
        jnp.dot(price, w1_ref[...], preferred_element_type=jnp.float32)
        + b1_ref[...]
    )
    # strategy_t = h_t @ W2_t.T + b2_t for all t at once (K = T*nodes).
    strat = (
        jnp.dot(h, w2_ref[...], preferred_element_type=jnp.float32)
        + b2_ref[...]
    )

    # hedge = sum_{t,a} strategy * dx  -> (Bb, 1)
    hedge_ref[...] = jnp.sum(strat * dx, axis=1, keepdims=True)


def _round_up(n, m):
    return (n + m - 1) // m * m


def _pick_block_b(n128):
    """Batch tile in units of 128 lanes: largest m <= 8 (tile <= 1024) dividing the
    padded batch, preferring to leave >= 2 tiles so the 'parallel' grid axis can
    shard across both TensorCores on v7x (no-op on single-TC v5e/v6e)."""
    best = 1
    for m in range(1, min(n128, 8) + 1):
        if n128 % m:
            continue
        if n128 >= 2 and n128 // m < 2:
            continue
        best = m
    return best * 128


def hedge_network_forward(x, w1, b1, w2, b2):
    """x: [B, T+1, A] float32. Stacked per-time-step weights:
       w1: [T, nodes, A], b1: [T, nodes], w2: [T, A, nodes], b2: [T, A]
    Returns (price [B, A], hedge [B, 1]) matching the PyTorch module."""
    B, Tp1, A = x.shape
    T, nodes, _ = w1.shape
    assert Tp1 == T + 1
    TA, TN = T * A, T * nodes

    # ---- wrapper-side weight prep (tiny, fused under jit) --------------------
    eye = jnp.eye(T, dtype=w1.dtype)
    # Block-diagonal stacks: block (t, t) of w1_bd is w1[t].T, of w2_bd is w2[t].T.
    w1_bd = jnp.einsum("ts,tna->tasn", eye, w1).reshape(TA, TN)   # (T*A, T*nodes)
    w2_bd = jnp.einsum("ts,tan->tnsa", eye, w2).reshape(TN, TA)   # (T*nodes, T*A)
    b1_r = b1.reshape(1, TN)
    b2_r = b2.reshape(1, TA)

    # x stays in natural row-major layout: (B, T+1, A) -> (B, (T+1)*A) is a free
    # collapsing reshape (no transpose, no extra HBM pass over x).
    x2 = x.reshape(B, Tp1 * A)

    # Zero-pad the batch to a multiple of 128 only when needed; padded rows are
    # computed but sliced off (each batch row is independent).
    Bp = _round_up(B, 128)
    if Bp != B:
        x2 = jnp.pad(x2, ((0, Bp - B), (0, 0)))

    block_b = _pick_block_b(Bp // 128)
    grid = (Bp // block_b,)

    cost = pl.CostEstimate(
        flops=4 * Bp * TA * TN,                       # two dense (block-diag) matmuls
        transcendentals=Bp * TN,                      # tanh
        bytes_accessed=4 * (Bp * Tp1 * A + 2 * TA * TN + TN + TA + Bp),
    )

    hedge_full = pl.pallas_call(
        _hedge_kernel,
        out_shape=jax.ShapeDtypeStruct((Bp, 1), jnp.float32),
        grid_spec=pltpu.PrefetchScalarGridSpec(
            num_scalar_prefetch=0,
            grid=grid,
            in_specs=[
                pl.BlockSpec((block_b, Tp1 * A), lambda i: (i, 0)),  # prices (batch tile)
                pl.BlockSpec((TA, TN), lambda i: (0, 0)),            # W1 block-diag
                pl.BlockSpec((1, TN), lambda i: (0, 0)),             # b1
                pl.BlockSpec((TN, TA), lambda i: (0, 0)),            # W2 block-diag
                pl.BlockSpec((1, TA), lambda i: (0, 0)),             # b2
            ],
            out_specs=pl.BlockSpec((block_b, 1), lambda i: (i, 0)),  # hedge
        ),
        compiler_params=pltpu.CompilerParams(
            # Batch tiles are independent -> parallel (megacore on v7x).
            dimension_semantics=("parallel",),
            vmem_limit_bytes=32 * 1024 * 1024,
        ),
        cost_estimate=cost,
    )(x2, w1_bd, b1_r, w2_bd, b2_r)

    price = x[:, T, :]            # final price is just an input slice
    hedge = hedge_full[:B]        # drop padded rows -> (B, 1)
    return price, hedge


def _reference_forward(x, w1, b1, w2, b2):
    """Pure-JAX reference mirroring the PyTorch loop."""
    T = w1.shape[0]
    price = x[:, 0, :]
    hedge = jnp.zeros((x.shape[0], 1), jnp.float32)
    for j in range(T):
        h = jnp.tanh(price @ w1[j].T + b1[j])
        strategy = h @ w2[j].T + b2[j]
        pricenew = x[:, j + 1, :]
        hedge = hedge + jnp.sum(strategy * (pricenew - price),
                                axis=1, keepdims=True)
        price = pricenew
    return price, hedge


if __name__ == "__main__":
    # Small shapes consistent with the module defaults.
    B = 8            # batch
    T = 8            # time_steps
    A = 4            # num_assets
    NODES = 32       # hidden nodes

    key = jax.random.PRNGKey(0)
    kx, k1, k2, k3, k4 = jax.random.split(key, 5)

    x = jax.random.normal(kx, (B, T + 1, A), dtype=jnp.float32)

    # Deterministic per-time-step parameters (PyTorch Linear weight is [out, in]).
    w1 = 0.3 * jax.random.normal(k1, (T, NODES, A), dtype=jnp.float32)
    b1 = 0.1 * jax.random.normal(k2, (T, NODES), dtype=jnp.float32)
    w2 = 0.3 * jax.random.normal(k3, (T, A, NODES), dtype=jnp.float32)
    b2 = 0.1 * jax.random.normal(k4, (T, A), dtype=jnp.float32)

    fwd = jax.jit(hedge_network_forward)
    price, hedge = fwd(x, w1, b1, w2, b2)
    jax.block_until_ready((price, hedge))

    price_ref, hedge_ref = _reference_forward(x, w1, b1, w2, b2)
    assert price.shape == (B, A) and hedge.shape == (B, 1)
    assert jnp.allclose(price, price_ref, atol=1e-5, rtol=1e-5)
    assert jnp.allclose(hedge, hedge_ref, atol=1e-5, rtol=1e-5)

    print("KERNEL_OK")
</pallas_src>

<mosaic_0001>
module attributes {stable_mosaic.version = 11 : i64} {
  func.func @_hedge_kernel(%arg0: i32, %arg1: memref<128x36xf32, #tpu.memory_space<vmem>>, %arg2: memref<32x256xf32, #tpu.memory_space<vmem>>, %arg3: memref<1x256xf32, #tpu.memory_space<vmem>>, %arg4: memref<256x32xf32, #tpu.memory_space<vmem>>, %arg5: memref<1x32xf32, #tpu.memory_space<vmem>>, %arg6: memref<128x1xf32, #tpu.memory_space<vmem>>) attributes {dimension_semantics = [#tpu.dimension_semantics<parallel>], iteration_bounds = array<i64: 1>, scalar_prefetch = 0 : i64, scratch_operands = 0 : i64, tpu.core_type = #tpu.core_type<tc>, window_params = [{transform_indices = @transform_0, window_bounds = array<i64: 128, 36>}, {pipeline_mode = #tpu.pipeline_mode<synchronous>, transform_indices = @transform_1, window_bounds = array<i64: 32, 256>}, {pipeline_mode = #tpu.pipeline_mode<synchronous>, transform_indices = @transform_2, window_bounds = array<i64: 1, 256>}, {pipeline_mode = #tpu.pipeline_mode<synchronous>, transform_indices = @transform_3, window_bounds = array<i64: 256, 32>}, {pipeline_mode = #tpu.pipeline_mode<synchronous>, transform_indices = @transform_4, window_bounds = array<i64: 1, 32>}, {transform_indices = @transform_5, window_bounds = array<i64: 128, 1>}]} {
    %c0 = arith.constant 0 : index
    %c0_0 = arith.constant 0 : index
    %0 = vector.load %arg1[%c0, %c0_0] : memref<128x36xf32, #tpu.memory_space<vmem>>, vector<128x36xf32>
    %1 = vector.extract_strided_slice %0 {offsets = [0, 0], sizes = [128, 32], strides = [1, 1]} : vector<128x36xf32> to vector<128x32xf32>
    %2 = vector.extract_strided_slice %0 {offsets = [0, 4], sizes = [128, 32], strides = [1, 1]} : vector<128x36xf32> to vector<128x32xf32>
    %3 = arith.subf %2, %1 : vector<128x32xf32>
    %c0_1 = arith.constant 0 : index
    %c0_2 = arith.constant 0 : index
    %4 = vector.load %arg2[%c0_1, %c0_2] : memref<32x256xf32, #tpu.memory_space<vmem>>, vector<32x256xf32>
    %cst = arith.constant dense<0.000000e+00> : vector<128x256xf32>
    %5 = tpu.matmul %1, %4, %cst {dimension_numbers = #tpu.dot_dimension_numbers<[1], [0], [0], [1], [0, 0, 1, 1], [], []>} : vector<128x32xf32>, vector<32x256xf32>, vector<128x256xf32> -> vector<128x256xf32>
    %c0_3 = arith.constant 0 : index
    %c0_4 = arith.constant 0 : index
    %6 = vector.load %arg3[%c0_3, %c0_4] : memref<1x256xf32, #tpu.memory_space<vmem>>, vector<1x256xf32>
    %7 = vector.broadcast %6 : vector<1x256xf32> to vector<128x256xf32>
    %8 = arith.addf %5, %7 : vector<128x256xf32>
    %9 = math.tanh %8 : vector<128x256xf32>
    %c0_5 = arith.constant 0 : index
    %c0_6 = arith.constant 0 : index
    %10 = vector.load %arg4[%c0_5, %c0_6] : memref<256x32xf32, #tpu.memory_space<vmem>>, vector<256x32xf32>
    %cst_7 = arith.constant dense<0.000000e+00> : vector<128x32xf32>
    %11 = tpu.matmul %9, %10, %cst_7 {dimension_numbers = #tpu.dot_dimension_numbers<[1], [0], [0], [1], [0, 0, 1, 1], [], []>} : vector<128x256xf32>, vector<256x32xf32>, vector<128x32xf32> -> vector<128x32xf32>
    %c0_8 = arith.constant 0 : index
    %c0_9 = arith.constant 0 : index
    %12 = vector.load %arg5[%c0_8, %c0_9] : memref<1x32xf32, #tpu.memory_space<vmem>>, vector<1x32xf32>
    %13 = vector.broadcast %12 : vector<1x32xf32> to vector<128x32xf32>
    %14 = arith.addf %11, %13 : vector<128x32xf32>
    %15 = arith.mulf %14, %3 : vector<128x32xf32>
    %cst_10 = arith.constant dense<0.000000e+00> : vector<128xf32>
    %16 = vector.multi_reduction <add>, %15, %cst_10 [1] : vector<128x32xf32> to vector<128xf32>
    %17 = vector.shape_cast %16 : vector<128xf32> to vector<128x1xf32>
    %c0_11 = arith.constant 0 : index
    %c0_12 = arith.constant 0 : index
    %18 = vector.load %arg6[%c0_11, %c0_12] : memref<128x1xf32, #tpu.memory_space<vmem>>, vector<128x1xf32>
    tpu.vector_store %arg6[%c0_11, %c0_12], %17 {strides = array<i32>} : memref<128x1xf32, #tpu.memory_space<vmem>>, vector<128x1xf32>,
    return
  }
  func.func @transform_0(%arg0: i32) -> (i32, i32) {
    %c0_i32 = arith.constant 0 : i32
    %c0_i32_0 = arith.constant 0 : i32
    return %arg0, %c0_i32 : i32, i32
  }
  func.func @transform_1(%arg0: i32) -> (i32, i32) {
    %c0_i32 = arith.constant 0 : i32
    %c0_i32_0 = arith.constant 0 : i32
    %c0_i32_1 = arith.constant 0 : i32
    return %c0_i32, %c0_i32_0 : i32, i32
  }
  func.func @transform_2(%arg0: i32) -> (i32, i32) {
    %c0_i32 = arith.constant 0 : i32
    %c0_i32_0 = arith.constant 0 : i32
    %c0_i32_1 = arith.constant 0 : i32
    return %c0_i32, %c0_i32_0 : i32, i32
  }
  func.func @transform_3(%arg0: i32) -> (i32, i32) {
    %c0_i32 = arith.constant 0 : i32
    %c0_i32_0 = arith.constant 0 : i32
    %c0_i32_1 = arith.constant 0 : i32
    return %c0_i32, %c0_i32_0 : i32, i32
  }
  func.func @transform_4(%arg0: i32) -> (i32, i32) {
    %c0_i32 = arith.constant 0 : i32
    %c0_i32_0 = arith.constant 0 : i32
    %c0_i32_1 = arith.constant 0 : i32
    return %c0_i32, %c0_i32_0 : i32, i32
  }
  func.func @transform_5(%arg0: i32) -> (i32, i32) {
    %c0_i32 = arith.constant 0 : i32
    %c0_i32_0 = arith.constant 0 : i32
    return %arg0, %c0_i32 : i32, i32
  }
}

</mosaic_0001>

<llo_original>
// kernel: hedge_network_forward.1
$region0: #{hedge_network_forward.1}
  #allocation0 [shape = 'u32[]', space=smem, size = 0x4, offset = 0x4, fixed_abs, tag = 'smem constant byte address 0x4 - core index']
  #allocation1 [shape = 'u32[144,128]{1,0:T(1,128)}', space=vmem, size = 0x12000, scoped, tag = 'internal scratch']
  %s0 = inlined_call_operand.vmem [shape: f32[128,36], index: 0, kind: input, shape index: {}]
  %s1 = inlined_call_operand.vmem [shape: f32[32,256], index: 1, kind: input, shape index: {}]
  %s2 = inlined_call_operand.vmem [shape: f32[1,256], index: 2, kind: input, shape index: {}]
  %s3 = inlined_call_operand.vmem [shape: f32[256,32], index: 3, kind: input, shape index: {}]
  %s4 = inlined_call_operand.vmem [shape: f32[1,32], index: 4, kind: input, shape index: {}]
  %s5 = inlined_call_operand.vmem [shape: f32[128,1], index: 5, kind: output, shape index: {}]
  %s6 = sld [smem:[#allocation0]]
  $region30: #{hedge_network_forward.1} parent=0
    _
  %s8 = ssub.s32 1, %s6
  %s9 = scalar_select 0, %s8, %s6
  // Predicated region
  $region2: #{hedge_network_forward.1} parent=0 // pred_check
    _
  $region3: #{hedge_network_forward.1} parent=0 // pred_check_branch
    %11 = sbr.rel (0) target = $region5
  $region4: #{hedge_network_forward.1} parent=0 // pred_region
    _
  $region5: #{hedge_network_forward.1} parent=0 // pred_fallthru
    _
  // Predicated region
  $region6: #{hedge_network_forward.1} parent=0 // pred_check
    _
  $region7: #{hedge_network_forward.1} parent=0 // pred_check_branch
    %13 = sbr.rel (0) target = $region9
  $region8: #{hedge_network_forward.1} parent=0 // pred_region
    _
  $region9: #{hedge_network_forward.1} parent=0 // pred_fallthru
    _
  // Predicated region
  $region10: #{hedge_network_forward.1} parent=0 // pred_check
    _
  $region11: #{hedge_network_forward.1} parent=0 // pred_check_branch
    %15 = sbr.rel (0) target = $region13
  $region12: #{hedge_network_forward.1} parent=0 // pred_region
    _
  $region13: #{hedge_network_forward.1} parent=0 // pred_fallthru
    _
  // Predicated region
  $region14: #{hedge_network_forward.1} parent=0 // pred_check
    _
  $region15: #{hedge_network_forward.1} parent=0 // pred_check_branch
    %17 = sbr.rel (0) target = $region17
  $region16: #{hedge_network_forward.1} parent=0 // pred_region
    _
  $region17: #{hedge_network_forward.1} parent=0 // pred_fallthru
    _
  // Predicated region
  $region18: #{hedge_network_forward.1} parent=0 // pred_check
    _
  $region19: #{hedge_network_forward.1} parent=0 // pred_check_branch
    %19 = sbr.rel (0) target = $region21
  $region20: #{hedge_network_forward.1} parent=0 // pred_region
    _
  $region21: #{hedge_network_forward.1} parent=0 // pred_fallthru
    _
  %v20 = vld [vmem:[%s0] sm:$0xff]
  %v21 = vld [vmem:[%s0 + $0x8] sm:$0xff]
  %v22 = vld [vmem:[%s0 + $0x10] sm:$0xff]
  %v23 = vld [vmem:[%s0 + $0x18] sm:$0xff]
  %v24 = vld [vmem:[%s0 + $0x20] sm:$0xff]
  %v25 = vld [vmem:[%s0 + $0x28] sm:$0xff]
  %v26 = vld [vmem:[%s0 + $0x30] sm:$0xff]
  %v27 = vld [vmem:[%s0 + $0x38] sm:$0xff]
  %v28 = vld [vmem:[%s0 + $0x40] sm:$0xff]
  %v29 = vld [vmem:[%s0 + $0x48] sm:$0xff]
  %v30 = vld [vmem:[%s0 + $0x50] sm:$0xff]
  %v31 = vld [vmem:[%s0 + $0x58] sm:$0xff]
  %v32 = vld [vmem:[%s0 + $0x60] sm:$0xff]
  %v33 = vld [vmem:[%s0 + $0x68] sm:$0xff]
  %v34 = vld [vmem:[%s0 + $0x70] sm:$0xff]
  %v35 = vld [vmem:[%s0 + $0x78] sm:$0xff]
  %52 = vrot.lane.b32.xlu0 %v20, 4
  %v53 = vpop.permute.xlu0 %52
  %54 = vrot.lane.b32.xlu0 %v21, 4
  %v55 = vpop.permute.xlu0 %54
  %56 = vrot.lane.b32.xlu0 %v22, 4
  %v57 = vpop.permute.xlu0 %56
  %58 = vrot.lane.b32.xlu0 %v23, 4
  %v59 = vpop.permute.xlu0 %58
  %60 = vrot.lane.b32.xlu0 %v24, 4
  %v61 = vpop.permute.xlu0 %60
  %62 = vrot.lane.b32.xlu0 %v25, 4
  %v63 = vpop.permute.xlu0 %62
  %64 = vrot.lane.b32.xlu0 %v26, 4
  %v65 = vpop.permute.xlu0 %64
  %66 = vrot.lane.b32.xlu0 %v27, 4
  %v67 = vpop.permute.xlu0 %66
  %68 = vrot.lane.b32.xlu0 %v28, 4
  %v69 = vpop.permute.xlu0 %68
  %70 = vrot.lane.b32.xlu0 %v29, 4
  %v71 = vpop.permute.xlu0 %70
  %72 = vrot.lane.b32.xlu0 %v30, 4
  %v73 = vpop.permute.xlu0 %72
  %74 = vrot.lane.b32.xlu0 %v31, 4
  %v75 = vpop.permute.xlu0 %74
  %76 = vrot.lane.b32.xlu0 %v32, 4
  %v77 = vpop.permute.xlu0 %76
  %78 = vrot.lane.b32.xlu0 %v33, 4
  %v79 = vpop.permute.xlu0 %78
  %80 = vrot.lane.b32.xlu0 %v34, 4
  %v81 = vpop.permute.xlu0 %80
  %82 = vrot.lane.b32.xlu0 %v35, 4
  %v83 = vpop.permute.xlu0 %82
  %v100 = vsub.f32 %v20, %v53
  %v101 = vsub.f32 %v21, %v55
  %v102 = vsub.f32 %v22, %v57
  %v103 = vsub.f32 %v23, %v59
  %v104 = vsub.f32 %v24, %v61
  %v105 = vsub.f32 %v25, %v63
  %v106 = vsub.f32 %v26, %v65
  %v107 = vsub.f32 %v27, %v67
  %v108 = vsub.f32 %v28, %v69
  %v109 = vsub.f32 %v29, %v71
  %v110 = vsub.f32 %v30, %v73
  %v111 = vsub.f32 %v31, %v75
  %v112 = vsub.f32 %v32, %v77
  %v113 = vsub.f32 %v33, %v79
  %v114 = vsub.f32 %v34, %v81
  %v115 = vsub.f32 %v35, %v83
  %v116 = vld [vmem:[%s1] sm:$0xff]
  %v117 = vld [vmem:[%s1 + $0x8] sm:$0xff]
  %v118 = vld [vmem:[%s1 + $0x10] sm:$0xff]
  %v119 = vld [vmem:[%s1 + $0x18] sm:$0xff]
  %v120 = vld [vmem:[%s1 + $0x20] sm:$0xff]
  %v121 = vld [vmem:[%s1 + $0x28] sm:$0xff]
  %v122 = vld [vmem:[%s1 + $0x30] sm:$0xff]
  %v123 = vld [vmem:[%s1 + $0x38] sm:$0xff]
  %v124 = vld [vmem:[%s2] sm:$0x3]
  %v126 = vlaneseq
  %v127 = vshrl.u32 %v126, 7
  %v128 = vsub.s32 0, %v127
  %v129 = vrot.slane %v124, %v128
  %v130 = vlaneseq
  %v131 = vshrl.u32 %v130, 7
  %v132 = vsub.s32 1, %v131
  %v133 = vrot.slane %v124, %v132
  %vm136 = vcmask 261120
  %v137 = vsel %vm136, %v20, 0
  %v139 = vsel %vm136, %v21, 0
  %v141 = vsel %vm136, %v22, 0
  %v143 = vsel %vm136, %v23, 0
  %v145 = vsel %vm136, %v24, 0
  %v147 = vsel %vm136, %v25, 0
  %v149 = vsel %vm136, %v26, 0
  %v151 = vsel %vm136, %v27, 0
  %v153 = vsel %vm136, %v28, 0
  %v155 = vsel %vm136, %v29, 0
  %v157 = vsel %vm136, %v30, 0
  %v159 = vsel %vm136, %v31, 0
  %v161 = vsel %vm136, %v32, 0
  %v163 = vsel %vm136, %v33, 0
  %v165 = vsel %vm136, %v34, 0
  %v167 = vsel %vm136, %v35, 0
  %169 = vmatprep.subr.mxu0 %v117
  %170 = vmatpush1.msra.mxu0 %v116
  %171 = vmatprep.subr.mxu0 %v119
  %172 = vmatpush1.msra.mxu0 %v118
  %173 = vmatprep.subr.mxu0 %v121
  %174 = vmatpush1.msra.mxu0 %v120
  %175 = vmatprep.subr.mxu0 %v123
  %176 = vmatpush1.msra.mxu0 %v122
  %177 = vmatprep.subr.mxu0 0.0
  %178 = vmatpush1.msra.mxu0 0.0
  %179 = vmatprep.subr.mxu0 0.0
  %180 = vmatpush1.msra.mxu0 0.0
  %181 = vmatprep.subr.mxu0 0.0
  %182 = vmatpush1.msra.mxu0 0.0
  %183 = vmatprep.subr.mxu0 0.0
  %184 = vmatpush1.msra.mxu0 0.0
  %185 = vmatprep.subr.mxu0 0.0
  %186 = vmatpush1.msra.mxu0 0.0
  %187 = vmatprep.subr.mxu0 0.0
  %188 = vmatpush1.msra.mxu0 0.0
  %189 = vmatprep.subr.mxu0 0.0
  %190 = vmatpush1.msra.mxu0 0.0
  %191 = vmatprep.subr.mxu0 0.0
  %192 = vmatpush1.msra.mxu0 0.0
  %193 = vmatprep.subr.mxu0 0.0
  %194 = vmatpush1.msra.mxu0 0.0
  %195 = vmatprep.subr.mxu0 0.0
  %196 = vmatpush1.msra.mxu0 0.0
  %197 = vmatprep.subr.mxu0 0.0
  %198 = vmatpush1.msra.mxu0 0.0
  %199 = vmatprep.subr.mxu0 0.0
  %200 = vmatpush1.msra.mxu0 0.0
  %201 = vmatprep.subr.mxu0 0.0
  %202 = vmatpush1.msra.mxu0 0.0
  %203 = vmatprep.subr.mxu0 0.0
  %204 = vmatpush1.msra.mxu0 0.0
  %205 = vmatprep.subr.mxu0 0.0
  %206 = vmatpush1.msra.mxu0 0.0
  %207 = vmatprep.subr.mxu0 0.0
  %208 = vmatpush1.msra.mxu0 0.0
  %209 = vmatprep.subr.mxu0 0.0
  %210 = vmatpush1.msra.mxu0 0.0
  %211 = vmatprep.subr.mxu0 0.0
  %212 = vmatpush1.msra.mxu0 0.0
  %213 = vmatprep.subr.mxu0 0.0
  %214 = vmatpush1.msra.mxu0 0.0
  %215 = vmatprep.subr.mxu0 0.0
  %216 = vmatpush1.msra.mxu0 0.0
  %217 = vmatprep.subr.mxu0 0.0
  %218 = vmatpush1.msra.mxu0 0.0
  %219 = vmatprep.subr.mxu0 0.0
  %220 = vmatpush1.msra.mxu0 0.0
  %221 = vmatprep.subr.mxu0 0.0
  %222 = vmatpush1.msra.mxu0 0.0
  %223 = vmatprep.subr.mxu0 0.0
  %224 = vmatpush1.msra.mxu0 0.0
  %225 = vmatprep.subr.mxu0 0.0
  %226 = vmatpush1.msra.mxu0 0.0
  %227 = vmatprep.subr.mxu0 0.0
  %228 = vmatpush1.msra.mxu0 0.0
  %229 = vmatprep.subr.mxu0 0.0
  %230 = vmatpush1.msra.mxu0 0.0
  %231 = vmatprep.subr.mxu0 0.0
  %232 = vmatpush1.msra.mxu0 0.0
  %233 = vmatprep.mubr.f32.mxu0 0.0
  %234 = vmatmul.mubr.f32.gmra.mrb[0].mxu0 %v137
  %v235 = vpop.f32.mrb[0].mxu0
  %v236 = vadd.f32 %v129, %v235
  %v237 = vpop.f32.mrb[0].mxu0
  %v238 = vadd.f32 %v133, %v237
  %239 = vmatprep.mubr.f32.mxu0 0.0
  %240 = vmatmul.mubr.f32.gmra.mrb[0].mxu0 %v139
  %v241 = vpop.f32.mrb[0].mxu0
  %v242 = vadd.f32 %v129, %v241
  %v243 = vpop.f32.mrb[0].mxu0
  %v244 = vadd.f32 %v133, %v243
  %245 = vmatprep.mubr.f32.mxu0 0.0
  %246 = vmatmul.mubr.f32.gmra.mrb[0].mxu0 %v141
  %v247 = vpop.f32.mrb[0].mxu0
  %v248 = vadd.f32 %v129, %v247
  %v249 = vpop.f32.mrb[0].mxu0
  %v250 = vadd.f32 %v133, %v249
  %251 = vmatprep.mubr.f32.mxu0 0.0
  %252 = vmatmul.mubr.f32.gmra.mrb[0].mxu0 %v143
  %v253 = vpop.f32.mrb[0].mxu0
  %v254 = vadd.f32 %v129, %v253
  %v255 = vpop.f32.mrb[0].mxu0
  %v256 = vadd.f32 %v133, %v255
  %257 = vmatprep.mubr.f32.mxu0 0.0
  %258 = vmatmul.mubr.f32.gmra.mrb[0].mxu0 %v145
  %v259 = vpop.f32.mrb[0].mxu0
  %v260 = vadd.f32 %v129, %v259
  %v261 = vpop.f32.mrb[0].mxu0
  %v262 = vadd.f32 %v133, %v261
  %263 = vmatprep.mubr.f32.mxu0 0.0
  %264 = vmatmul.mubr.f32.gmra.mrb[0].mxu0 %v147
  %v265 = vpop.f32.mrb[0].mxu0
  %v266 = vadd.f32 %v129, %v265
  %v267 = vpop.f32.mrb[0].mxu0
  %v268 = vadd.f32 %v133, %v267
  %269 = vmatprep.mubr.f32.mxu0 0.0
  %270 = vmatmul.mubr.f32.gmra.mrb[0].mxu0 %v149
  %v271 = vpop.f32.mrb[0].mxu0
  %v272 = vadd.f32 %v129, %v271
  %v273 = vpop.f32.mrb[0].mxu0
  %v274 = vadd.f32 %v133, %v273
  %275 = vmatprep.mubr.f32.mxu0 0.0
  %276 = vmatmul.mubr.f32.gmra.mrb[0].mxu0 %v151
  %v277 = vpop.f32.mrb[0].mxu0
  %v278 = vadd.f32 %v129, %v277
  %v279 = vpop.f32.mrb[0].mxu0
  %v280 = vadd.f32 %v133, %v279
  %281 = vmatprep.mubr.f32.mxu0 0.0
  %282 = vmatmul.mubr.f32.gmra.mrb[0].mxu0 %v153
  %v283 = vpop.f32.mrb[0].mxu0
  %v284 = vadd.f32 %v129, %v283
  %v285 = vpop.f32.mrb[0].mxu0
  %v286 = vadd.f32 %v133, %v285
  %287 = vmatprep.mubr.f32.mxu0 0.0
  %288 = vmatmul.mubr.f32.gmra.mrb[0].mxu0 %v155
  %v289 = vpop.f32.mrb[0].mxu0
  %v290 = vadd.f32 %v129, %v289
  %v291 = vpop.f32.mrb[0].mxu0
  %v292 = vadd.f32 %v133, %v291
  %293 = vmatprep.mubr.f32.mxu0 0.0
  %294 = vmatmul.mubr.f32.gmra.mrb[0].mxu0 %v157
  %v295 = vpop.f32.mrb[0].mxu0
  %v296 = vadd.f32 %v129, %v295
  %v297 = vpop.f32.mrb[0].mxu0
  %v298 = vadd.f32 %v133, %v297
  %299 = vmatprep.mubr.f32.mxu0 0.0
  %300 = vmatmul.mubr.f32.gmra.mrb[0].mxu0 %v159
  %v301 = vpop.f32.mrb[0].mxu0
  %v302 = vadd.f32 %v129, %v301
  %v303 = vpop.f32.mrb[0].mxu0
  %v304 = vadd.f32 %v133, %v303
  %305 = vmatprep.mubr.f32.mxu0 0.0
  %306 = vmatmul.mubr.f32.gmra.mrb[0].mxu0 %v161
  %v307 = vpop.f32.mrb[0].mxu0
  %v308 = vadd.f32 %v129, %v307
  %v309 = vpop.f32.mrb[0].mxu0
  %v310 = vadd.f32 %v133, %v309
  %311 = vmatprep.mubr.f32.mxu0 0.0
  %312 = vmatmul.mubr.f32.gmra.mrb[0].mxu0 %v163
  %v313 = vpop.f32.mrb[0].mxu0
  %v314 = vadd.f32 %v129, %v313
  %v315 = vpop.f32.mrb[0].mxu0
  %v316 = vadd.f32 %v133, %v315
  %317 = vmatprep.mubr.f32.mxu0 0.0
  %318 = vmatmul.mubr.f32.gmra.mrb[0].mxu0 %v165
  %v319 = vpop.f32.mrb[0].mxu0
  %v320 = vadd.f32 %v129, %v319
  %v321 = vpop.f32.mrb[0].mxu0
  %v322 = vadd.f32 %v133, %v321
  %323 = vmatprep.mubr.f32.mxu0 0.0
  %324 = vmatmul.mubr.f32.gmra.mrb[0].mxu0 %v167
  %v325 = vpop.f32.mrb[0].mxu0
  %v326 = vadd.f32 %v129, %v325
  %v327 = vpop.f32.mrb[0].mxu0
  %v328 = vadd.f32 %v133, %v327
  %329 = vdwg.mxu0
  %v330 = vtanh.pop %v236
  %v331 = vtanh.pop %v238
  %v332 = vtanh.pop %v242
  %v333 = vtanh.pop %v244
  %v334 = vtanh.pop %v248
  %v335 = vtanh.pop %v250
  %v336 = vtanh.pop %v254
  %v337 = vtanh.pop %v256
  %v338 = vtanh.pop %v260
  %v339 = vtanh.pop %v262
  %v340 = vtanh.pop %v266
  %v341 = vtanh.pop %v268
  %v342 = vtanh.pop %v272
  %v343 = vtanh.pop %v274
  %v344 = vtanh.pop %v278
  %v345 = vtanh.pop %v280
  %v346 = vtanh.pop %v284
  %v347 = vtanh.pop %v286
  %v348 = vtanh.pop %v290
  %v349 = vtanh.pop %v292
  %v350 = vtanh.pop %v296
  %v351 = vtanh.pop %v298
  %v352 = vtanh.pop %v302
  %v353 = vtanh.pop %v304
  %v354 = vtanh.pop %v308
  %v355 = vtanh.pop %v310
  %v356 = vtanh.pop %v314
  %v357 = vtanh.pop %v316
  %v358 = vtanh.pop %v320
  %v359 = vtanh.pop %v322
  %v360 = vtanh.pop %v326
  %v361 = vtanh.pop %v328
  %v362 = vld [vmem:[%s3] sm:$0xff]
  %v363 = vld [vmem:[%s3 + $0x8] sm:$0xff]
  %v364 = vld [vmem:[%s3 + $0x10] sm:$0xff]
  %v365 = vld [vmem:[%s3 + $0x18] sm:$0xff]
  %v366 = vld [vmem:[%s3 + $0x20] sm:$0xff]
  %v367 = vld [vmem:[%s3 + $0x28] sm:$0xff]
  %v368 = vld [vmem:[%s3 + $0x30] sm:$0xff]
  %v369 = vld [vmem:[%s3 + $0x38] sm:$0xff]
  %v370 = vld [vmem:[%s3 + $0x40] sm:$0xff]
  %v371 = vld [vmem:[%s3 + $0x48] sm:$0xff]
  %v372 = vld [vmem:[%s3 + $0x50] sm:$0xff]
  %v373 = vld [vmem:[%s3 + $0x58] sm:$0xff]
  %v374 = vld [vmem:[%s3 + $0x60] sm:$0xff]
  %v375 = vld [vmem:[%s3 + $0x68] sm:$0xff]
  %v376 = vld [vmem:[%s3 + $0x70] sm:$0xff]
  %v377 = vld [vmem:[%s3 + $0x78] sm:$0xff]
  %v378 = vld [vmem:[%s3 + $0x80] sm:$0xff]
  %v379 = vld [vmem:[%s3 + $0x88] sm:$0xff]
  %v380 = vld [vmem:[%s3 + $0x90] sm:$0xff]
  %v381 = vld [vmem:[%s3 + $0x98] sm:$0xff]
  %v382 = vld [vmem:[%s3 + $0xa0] sm:$0xff]
  %v383 = vld [vmem:[%s3 + $0xa8] sm:$0xff]
  %v384 = vld [vmem:[%s3 + $0xb0] sm:$0xff]
  %v385 = vld [vmem:[%s3 + $0xb8] sm:$0xff]
  %v386 = vld [vmem:[%s3 + $0xc0] sm:$0xff]
  %v387 = vld [vmem:[%s3 + $0xc8] sm:$0xff]
  %v388 = vld [vmem:[%s3 + $0xd0] sm:$0xff]
  %v389 = vld [vmem:[%s3 + $0xd8] sm:$0xff]
  %v390 = vld [vmem:[%s3 + $0xe0] sm:$0xff]
  %v391 = vld [vmem:[%s3 + $0xe8] sm:$0xff]
  %v392 = vld [vmem:[%s3 + $0xf0] sm:$0xff]
  %v393 = vld [vmem:[%s3 + $0xf8] sm:$0xff]
  %v394 = vld [vmem:[%s4] sm:$0x1]
  %v396 = vlaneseq
  %v397 = vshrl.u32 %v396, 7
  %v398 = vsub.s32 0, %v397
  %v399 = vrot.slane %v394, %v398
  %401 = vmatprep.subr.mxu0 0.0
  %402 = vmatpush1.msra.mxu0 %v362
  %403 = vmatprep.subr.mxu0 0.0
  %404 = vmatpush1.msra.mxu0 %v363
  %405 = vmatprep.subr.mxu0 0.0
  %406 = vmatpush1.msra.mxu0 %v364
  %407 = vmatprep.subr.mxu0 0.0
  %408 = vmatpush1.msra.mxu0 %v365
  %409 = vmatprep.subr.mxu0 0.0
  %410 = vmatpush1.msra.mxu0 %v366
  %411 = vmatprep.subr.mxu0 0.0
  %412 = vmatpush1.msra.mxu0 %v367
  %413 = vmatprep.subr.mxu0 0.0
  %414 = vmatpush1.msra.mxu0 %v368
  %415 = vmatprep.subr.mxu0 0.0
  %416 = vmatpush1.msra.mxu0 %v369
  %417 = vmatprep.subr.mxu0 0.0
  %418 = vmatpush1.msra.mxu0 %v370
  %419 = vmatprep.subr.mxu0 0.0
  %420 = vmatpush1.msra.mxu0 %v371
  %421 = vmatprep.subr.mxu0 0.0
  %422 = vmatpush1.msra.mxu0 %v372
  %423 = vmatprep.subr.mxu0 0.0
  %424 = vmatpush1.msra.mxu0 %v373
  %425 = vmatprep.subr.mxu0 0.0
  %426 = vmatpush1.msra.mxu0 %v374
  %427 = vmatprep.subr.mxu0 0.0
  %428 = vmatpush1.msra.mxu0 %v375
  %429 = vmatprep.subr.mxu0 0.0
  %430 = vmatpush1.msra.mxu0 %v376
  %431 = vmatprep.subr.mxu0 0.0
  %432 = vmatpush1.msra.mxu0 %v377
  %433 = vmatprep.subr.mxu0 0.0
  %434 = vmatpush1.msra.mxu0 %v378
  %435 = vmatprep.subr.mxu0 0.0
  %436 = vmatpush1.msra.mxu0 %v379
  %437 = vmatprep.subr.mxu0 0.0
  %438 = vmatpush1.msra.mxu0 %v380
  %439 = vmatprep.subr.mxu0 0.0
  %440 = vmatpush1.msra.mxu0 %v381
  %441 = vmatprep.subr.mxu0 0.0
  %442 = vmatpush1.msra.mxu0 %v382
  %443 = vmatprep.subr.mxu0 0.0
  %444 = vmatpush1.msra.mxu0 %v383
  %445 = vmatprep.subr.mxu0 0.0
  %446 = vmatpush1.msra.mxu0 %v384
  %447 = vmatprep.subr.mxu0 0.0
  %448 = vmatpush1.msra.mxu0 %v385
  %449 = vmatprep.subr.mxu0 0.0
  %450 = vmatpush1.msra.mxu0 %v386
  %451 = vmatprep.subr.mxu0 0.0
  %452 = vmatpush1.msra.mxu0 %v387
  %453 = vmatprep.subr.mxu0 0.0
  %454 = vmatpush1.msra.mxu0 %v388
  %455 = vmatprep.subr.mxu0 0.0
  %456 = vmatpush1.msra.mxu0 %v389
  %457 = vmatprep.subr.mxu0 0.0
  %458 = vmatpush1.msra.mxu0 %v390
  %459 = vmatprep.subr.mxu0 0.0
  %460 = vmatpush1.msra.mxu0 %v391
  %461 = vmatprep.subr.mxu0 0.0
  %462 = vmatpush1.msra.mxu0 %v392
  %463 = vmatprep.subr.mxu0 0.0
  %464 = vmatpush1.msra.mxu0 %v393
  %465 = vmatprep.mubr.f32.mxu0 %v331
  %466 = vmatmul.mubr.f32.gmra.mrb[0].mxu0 %v330
  %v467 = vpop.f32.mrb[0].mxu0
  %v468 = vadd.f32 %v399, %v467
  %v469 = vpop.f32.mrb[0].mxu0
  %470 = vmatprep.mubr.f32.mxu0 %v333
  %471 = vmatmul.mubr.f32.gmra.mrb[0].mxu0 %v332
  %v472 = vpop.f32.mrb[0].mxu0
  %v473 = vadd.f32 %v399, %v472
  %v474 = vpop.f32.mrb[0].mxu0
  %475 = vmatprep.mubr.f32.mxu0 %v335
  %476 = vmatmul.mubr.f32.gmra.mrb[0].mxu0 %v334
  %v477 = vpop.f32.mrb[0].mxu0
  %v478 = vadd.f32 %v399, %v477
  %v479 = vpop.f32.mrb[0].mxu0
  %480 = vmatprep.mubr.f32.mxu0 %v337
  %481 = vmatmul.mubr.f32.gmra.mrb[0].mxu0 %v336
  %v482 = vpop.f32.mrb[0].mxu0
  %v483 = vadd.f32 %v399, %v482
  %v484 = vpop.f32.mrb[0].mxu0
  %485 = vmatprep.mubr.f32.mxu0 %v339
  %486 = vmatmul.mubr.f32.gmra.mrb[0].mxu0 %v338
  %v487 = vpop.f32.mrb[0].mxu0
  %v488 = vadd.f32 %v399, %v487
  %v489 = vpop.f32.mrb[0].mxu0
  %490 = vmatprep.mubr.f32.mxu0 %v341
  %491 = vmatmul.mubr.f32.gmra.mrb[0].mxu0 %v340
  %v492 = vpop.f32.mrb[0].mxu0
  %v493 = vadd.f32 %v399, %v492
  %v494 = vpop.f32.mrb[0].mxu0
  %495 = vmatprep.mubr.f32.mxu0 %v343
  %496 = vmatmul.mubr.f32.gmra.mrb[0].mxu0 %v342
  %v497 = vpop.f32.mrb[0].mxu0
  %v498 = vadd.f32 %v399, %v497
  %v499 = vpop.f32.mrb[0].mxu0
  %500 = vmatprep.mubr.f32.mxu0 %v345
  %501 = vmatmul.mubr.f32.gmra.mrb[0].mxu0 %v344
  %v502 = vpop.f32.mrb[0].mxu0
  %v503 = vadd.f32 %v399, %v502
  %v504 = vpop.f32.mrb[0].mxu0
  %505 = vmatprep.mubr.f32.mxu0 %v347
  %506 = vmatmul.mubr.f32.gmra.mrb[0].mxu0 %v346
  %v507 = vpop.f32.mrb[0].mxu0
  %v508 = vadd.f32 %v399, %v507
  %v509 = vpop.f32.mrb[0].mxu0
  %510 = vmatprep.mubr.f32.mxu0 %v349
  %511 = vmatmul.mubr.f32.gmra.mrb[0].mxu0 %v348
  %v512 = vpop.f32.mrb[0].mxu0
  %v513 = vadd.f32 %v399, %v512
  %v514 = vpop.f32.mrb[0].mxu0
  %515 = vmatprep.mubr.f32.mxu0 %v351
  %516 = vmatmul.mubr.f32.gmra.mrb[0].mxu0 %v350
  %v517 = vpop.f32.mrb[0].mxu0
  %v518 = vadd.f32 %v399, %v517
  %v519 = vpop.f32.mrb[0].mxu0
  %520 = vmatprep.mubr.f32.mxu0 %v353
  %521 = vmatmul.mubr.f32.gmra.mrb[0].mxu0 %v352
  %v522 = vpop.f32.mrb[0].mxu0
  %v523 = vadd.f32 %v399, %v522
  %v524 = vpop.f32.mrb[0].mxu0
  %525 = vmatprep.mubr.f32.mxu0 %v355
  %526 = vmatmul.mubr.f32.gmra.mrb[0].mxu0 %v354
  %v527 = vpop.f32.mrb[0].mxu0
  %v528 = vadd.f32 %v399, %v527
  %v529 = vpop.f32.mrb[0].mxu0
  %530 = vmatprep.mubr.f32.mxu0 %v357
  %531 = vmatmul.mubr.f32.gmra.mrb[0].mxu0 %v356
  %v532 = vpop.f32.mrb[0].mxu0
  %v533 = vadd.f32 %v399, %v532
  %v534 = vpop.f32.mrb[0].mxu0
  %535 = vmatprep.mubr.f32.mxu0 %v359
  %536 = vmatmul.mubr.f32.gmra.mrb[0].mxu0 %v358
  %v537 = vpop.f32.mrb[0].mxu0
  %v538 = vadd.f32 %v399, %v537
  %v539 = vpop.f32.mrb[0].mxu0
  %540 = vmatprep.mubr.f32.mxu0 %v361
  %541 = vmatmul.mubr.f32.gmra.mrb[0].mxu0 %v360
  %v542 = vpop.f32.mrb[0].mxu0
  %v543 = vadd.f32 %v399, %v542
  %v544 = vpop.f32.mrb[0].mxu0
  %545 = vdwg.mxu0
  %562 = vrot.lane.b32.xlu0 %v100, 124
  %v563 = vpop.permute.xlu0 %562
  %564 = vrot.lane.b32.xlu0 %v101, 124
  %v565 = vpop.permute.xlu0 %564
  %566 = vrot.lane.b32.xlu0 %v102, 124
  %v567 = vpop.permute.xlu0 %566
  %568 = vrot.lane.b32.xlu0 %v103, 124
  %v569 = vpop.permute.xlu0 %568
  %570 = vrot.lane.b32.xlu0 %v104, 124
  %v571 = vpop.permute.xlu0 %570
  %572 = vrot.lane.b32.xlu0 %v105, 124
  %v573 = vpop.permute.xlu0 %572
  %574 = vrot.lane.b32.xlu0 %v106, 124
  %v575 = vpop.permute.xlu0 %574
  %576 = vrot.lane.b32.xlu0 %v107, 124
  %v577 = vpop.permute.xlu0 %576
  %578 = vrot.lane.b32.xlu0 %v108, 124
  %v579 = vpop.permute.xlu0 %578
  %580 = vrot.lane.b32.xlu0 %v109, 124
  %v581 = vpop.permute.xlu0 %580
  %582 = vrot.lane.b32.xlu0 %v110, 124
  %v583 = vpop.permute.xlu0 %582
  %584 = vrot.lane.b32.xlu0 %v111, 124
  %v585 = vpop.permute.xlu0 %584
  %586 = vrot.lane.b32.xlu0 %v112, 124
  %v587 = vpop.permute.xlu0 %586
  %588 = vrot.lane.b32.xlu0 %v113, 124
  %v589 = vpop.permute.xlu0 %588
  %590 = vrot.lane.b32.xlu0 %v114, 124
  %v591 = vpop.permute.xlu0 %590
  %592 = vrot.lane.b32.xlu0 %v115, 124
  %v593 = vpop.permute.xlu0 %592
  %v610 = vmul.f32 %v468, %v563
  %v611 = vmul.f32 %v473, %v565
  %v612 = vmul.f32 %v478, %v567
  %v613 = vmul.f32 %v483, %v569
  %v614 = vmul.f32 %v488, %v571
  %v615 = vmul.f32 %v493, %v573
  %v616 = vmul.f32 %v498, %v575
  %v617 = vmul.f32 %v503, %v577
  %v618 = vmul.f32 %v508, %v579
  %v619 = vmul.f32 %v513, %v581
  %v620 = vmul.f32 %v518, %v583
  %v621 = vmul.f32 %v523, %v585
  %v622 = vmul.f32 %v528, %v587
  %v623 = vmul.f32 %v533, %v589
  %v624 = vmul.f32 %v538, %v591
  %v625 = vmul.f32 %v543, %v593
  %v626 = vsel %vm136, %v610, 0.0
  %627 = vadd.xlane.f32.xlu0 %v626
  %v628 = vpop.xlane.xlu0 %627
  %v629 = vsel %vm136, %v611, 0.0
  %630 = vadd.xlane.f32.xlu0 %v629
  %v631 = vpop.xlane.xlu0 %630
  %v632 = vsel %vm136, %v612, 0.0
  %633 = vadd.xlane.f32.xlu0 %v632
  %v634 = vpop.xlane.xlu0 %633
  %v635 = vsel %vm136, %v613, 0.0
  %636 = vadd.xlane.f32.xlu0 %v635
  %v637 = vpop.xlane.xlu0 %636
  %v638 = vsel %vm136, %v614, 0.0
  %639 = vadd.xlane.f32.xlu0 %v638
  %v640 = vpop.xlane.xlu0 %639
  %v641 = vsel %vm136, %v615, 0.0
  %642 = vadd.xlane.f32.xlu0 %v641
  %v643 = vpop.xlane.xlu0 %642
  %v644 = vsel %vm136, %v616, 0.0
  %645 = vadd.xlane.f32.xlu0 %v644
  %v646 = vpop.xlane.xlu0 %645
  %v647 = vsel %vm136, %v617, 0.0
  %648 = vadd.xlane.f32.xlu0 %v647
  %v649 = vpop.xlane.xlu0 %648
  %v650 = vsel %vm136, %v618, 0.0
  %651 = vadd.xlane.f32.xlu0 %v650
  %v652 = vpop.xlane.xlu0 %651
  %v653 = vsel %vm136, %v619, 0.0
  %654 = vadd.xlane.f32.xlu0 %v653
  %v655 = vpop.xlane.xlu0 %654
  %v656 = vsel %vm136, %v620, 0.0
  %657 = vadd.xlane.f32.xlu0 %v656
  %v658 = vpop.xlane.xlu0 %657
  %v659 = vsel %vm136, %v621, 0.0
  %660 = vadd.xlane.f32.xlu0 %v659
  %v661 = vpop.xlane.xlu0 %660
  %v662 = vsel %vm136, %v622, 0.0
  %663 = vadd.xlane.f32.xlu0 %v662
  %v664 = vpop.xlane.xlu0 %663
  %v665 = vsel %vm136, %v623, 0.0
  %666 = vadd.xlane.f32.xlu0 %v665
  %v667 = vpop.xlane.xlu0 %666
  %v668 = vsel %vm136, %v624, 0.0
  %669 = vadd.xlane.f32.xlu0 %v668
  %v670 = vpop.xlane.xlu0 %669
  %v671 = vsel %vm136, %v625, 0.0
  %672 = vadd.xlane.f32.xlu0 %v671
  %v673 = vpop.xlane.xlu0 %672
  %vm674 = vcmask 7168
  %675 = vst.msk [vmem:[%s5] sm:$0xff] %vm674, %v628
  %676 = vst.msk [vmem:[%s5 + $0x8] sm:$0xff] %vm674, %v631
  %677 = vst.msk [vmem:[%s5 + $0x10] sm:$0xff] %vm674, %v634
  %678 = vst.msk [vmem:[%s5 + $0x18] sm:$0xff] %vm674, %v637
  %679 = vst.msk [vmem:[%s5 + $0x20] sm:$0xff] %vm674, %v640
  %680 = vst.msk [vmem:[%s5 + $0x28] sm:$0xff] %vm674, %v643
  %681 = vst.msk [vmem:[%s5 + $0x30] sm:$0xff] %vm674, %v646
  %682 = vst.msk [vmem:[%s5 + $0x38] sm:$0xff] %vm674, %v649
  %683 = vst.msk [vmem:[%s5 + $0x40] sm:$0xff] %vm674, %v652
  %684 = vst.msk [vmem:[%s5 + $0x48] sm:$0xff] %vm674, %v655
  %685 = vst.msk [vmem:[%s5 + $0x50] sm:$0xff] %vm674, %v658
  %686 = vst.msk [vmem:[%s5 + $0x58] sm:$0xff] %vm674, %v661
  %687 = vst.msk [vmem:[%s5 + $0x60] sm:$0xff] %vm674, %v664
  %688 = vst.msk [vmem:[%s5 + $0x68] sm:$0xff] %vm674, %v667
  %689 = vst.msk [vmem:[%s5 + $0x70] sm:$0xff] %vm674, %v670
  %690 = vst.msk [vmem:[%s5 + $0x78] sm:$0xff] %vm674, %v673
  // Predicated region
  $region22: #{hedge_network_forward.1} parent=0 // pred_check
    _
  $region23: #{hedge_network_forward.1} parent=0 // pred_check_branch
    %692 = sbr.rel (0) target = $region25
  $region24: #{hedge_network_forward.1} parent=0 // pred_region
    _
  $region25: #{hedge_network_forward.1} parent=0 // pred_fallthru
    _
  // Predicated region
  $region26: #{hedge_network_forward.1} parent=0 // pred_check
    _
  $region27: #{hedge_network_forward.1} parent=0 // pred_check_branch
    %694 = sbr.rel (0) target = $region29
  $region28: #{hedge_network_forward.1} parent=0 // pred_region
    _
  $region29: #{hedge_network_forward.1} parent=0 // pred_fallthru
    _

</llo_original>
